<compile_context>
chip_gen: v6e
topology: v6e:2x2x1
jax: 0.10.0
libtpu: 0.0.40
codegen_flags: <defaults>
</compile_context>

<pallas_src>
import functools

import jax
import jax.numpy as jnp
from jax import lax
from jax.experimental import pallas as pl
from jax.experimental.pallas import tpu as pltpu


def _round_up(x: int, m: int) -> int:
    return ((x + m - 1) // m) * m


def _choose_tile_b(batch: int, feat_dim: int) -> int:
    """Pick a batch tile: multiple of 8 rows, ~2 MiB f32 block, capped at 512.

    2 MiB per (double-buffered) features block keeps the pipeline well under
    the scoped-VMEM default on every generation (incl. v7x's 64 MiB physical)
    while being large enough to amortize per-grid-step overhead.
    """
    target_bytes = 2 * 1024 * 1024
    tb = max(8, min(512, target_bytes // max(feat_dim * 4, 1)))
    tb = max(8, (tb // 8) * 8)
    return min(tb, _round_up(batch, 8))


def _qccpn_tile_kernel(features_ref, labels_ref, centers_ref, cnorm_ref,
                       ccon_ref, out_ref, *, gamma, num_classes, batch,
                       tile_b, matmul_dtype):
    f32 = jnp.float32
    f = features_ref[...].astype(f32)          # (TB, D)
    c = centers_ref[...].astype(f32)           # (C_pad, D)  (zero-padded rows)
    lab = labels_ref[...]                      # (TB, 1) int32
    cn = cnorm_ref[...]                        # (1, C_pad)  ||c_k||^2
    ccon = ccon_ref[...]                       # (1, C_pad)  clip(eps - contrast_k, 0)

    tb, _ = f.shape
    c_pad = c.shape[0]

    # Row norms (VPU, f32).
    fn = jnp.sum(f * f, axis=1, keepdims=True)                 # (TB, 1)

    # dist[b,k] = ||f_b||^2 + ||c_k||^2 - 2 f_b . c_k   (MXU matmul, f32 acc).
    fm = f.astype(matmul_dtype)
    cm = c.astype(matmul_dtype)
    gram = lax.dot_general(fm, cm, (((1,), (1,)), ((), ())),
                           preferred_element_type=f32)         # (TB, C_pad)
    dist = jnp.maximum(fn + cn - 2.0 * gram, 0.0)

    # Mask padded classes out of the softmax (finite large-negative, so that
    # onehot * logits stays 0 * (-1e30) = 0 rather than NaN).
    cls = lax.broadcasted_iota(jnp.int32, (tb, c_pad), 1)
    valid_c = cls < num_classes
    logits = jnp.where(valid_c, (-gamma) * dist, f32(-1e30))

    # Cross entropy on logits with integer targets:  lse - logits[b, label_b].
    m = jnp.max(logits, axis=1, keepdims=True)
    lse = m + jnp.log(jnp.sum(jnp.exp(logits - m), axis=1, keepdims=True))
    onehot = (cls == lab).astype(f32)                          # (TB, C_pad)
    picked = jnp.sum(logits * onehot, axis=1, keepdims=True)   # (TB, 1)

    # Mask batch-padding rows.
    row = pl.program_id(0) * tile_b + lax.broadcasted_iota(jnp.int32, (tb, 1), 0)
    rmask = (row < batch).astype(f32)                          # (TB, 1)

    dce_sum = jnp.sum((lse - picked) * rmask)                  # sum of per-sample CE
    l2_sum = jnp.sum(jnp.sum(onehot * ccon, axis=1, keepdims=True) * rmask)

    # Lane-dense (8, 128) partial-sum block: lane 0 = sum(CE), lane 1 = sum(L2),
    # value replicated across sublanes so the store is a full-width vst.
    lane = lax.broadcasted_iota(jnp.int32, (8, 128), 1)
    out_ref[...] = jnp.where(lane == 0, dce_sum,
                             jnp.where(lane == 1, l2_sum, f32(0.0)))


def qccpn_loss(features, labels, centers, *, gamma, epsilon_contrast, w1=1.0,
               tile_b=None, matmul_dtype=jnp.float32):
    """Forward pass of QCCPNLoss.

    matmul_dtype: set to jnp.bfloat16 on v6e/v7x to halve MXU/HBM cost of the
    feature stream (norms / softmax / elementwise stay in f32); default f32
    keeps bit-level fidelity with the reference.
    """
    f = jnp.asarray(features, jnp.float32)
    c = jnp.asarray(centers, jnp.float32)
    lab = jnp.asarray(labels, jnp.int32)

    batch, feat_dim = int(f.shape[0]), int(f.shape[1])
    num_classes = int(c.shape[0])

    c_pad = _round_up(max(num_classes, 1), 128)
    if tile_b is None:
        tile_b = _choose_tile_b(batch, feat_dim)
    tile_b = max(8, (int(tile_b) // 8) * 8)
    tile_b = min(tile_b, _round_up(batch, 8))
    num_tiles = -(-batch // tile_b)
    b_pad = num_tiles * tile_b

    # Zero-pad batch and class dimensions.
    f_p = jnp.zeros((b_pad, feat_dim), jnp.float32).at[:batch].set(f)
    lab_p = jnp.zeros((b_pad, 1), jnp.int32).at[:batch, 0].set(lab)
    c_p = jnp.zeros((c_pad, feat_dim), jnp.float32).at[:num_classes].set(c)

    # Centers-only terms: computed ONCE here (tiny) instead of per grid step.
    cn_real = jnp.sum(c * c, axis=1)                                # (C,)
    gram_c = jnp.dot(c, c.T, preferred_element_type=jnp.float32)    # (C, C) MXU
    cc = jnp.maximum(cn_real[:, None] + cn_real[None, :] - 2.0 * gram_c, 0.0)
    cc = cc * (1.0 - jnp.eye(num_classes, dtype=jnp.float32))       # zero diagonal
    denom = max(num_classes - 1, 1)                                 # guard C == 1
    contrast = jnp.sum(cc, axis=1) / jnp.float32(denom)             # (C,)
    ccon_real = jnp.maximum(jnp.float32(epsilon_contrast) - contrast, 0.0)

    cnorm = jnp.zeros((1, c_pad), jnp.float32).at[0, :num_classes].set(cn_real)
    ccon = jnp.zeros((1, c_pad), jnp.float32).at[0, :num_classes].set(ccon_real)

    kernel = functools.partial(
        _qccpn_tile_kernel,
        gamma=float(gamma),
        num_classes=num_classes,
        batch=batch,
        tile_b=tile_b,
        matmul_dtype=matmul_dtype,
    )

    out = pl.pallas_call(
        kernel,
        out_shape=jax.ShapeDtypeStruct((num_tiles * 8, 128), jnp.float32),
        grid=(num_tiles,),
        in_specs=[
            pl.BlockSpec((tile_b, feat_dim), lambda i: (i, 0)),   # features (pipelined)
            pl.BlockSpec((tile_b, 1), lambda i: (i, 0)),          # labels
            pl.BlockSpec((c_pad, feat_dim), lambda i: (0, 0)),    # centers (resident)
            pl.BlockSpec((1, c_pad), lambda i: (0, 0)),           # ||c||^2 per class
            pl.BlockSpec((1, c_pad), lambda i: (0, 0)),           # clipped contrast per class
        ],
        out_specs=pl.BlockSpec((8, 128), lambda i: (i, 0)),
        compiler_params=pltpu.CompilerParams(
            dimension_semantics=("parallel",),        # v7x: shard tiles over both TCs
            vmem_limit_bytes=32 * 1024 * 1024,
        ),
    )(f_p, lab_p, c_p, cnorm, ccon)

    partial = out.reshape(num_tiles, 8, 128)[:, 0, :]   # (num_tiles, 128)
    dce = jnp.sum(partial[:, 0]) / jnp.float32(batch)
    l2 = jnp.sum(partial[:, 1]) / jnp.float32(batch)
    return dce + jnp.float32(w1) * l2


def _reference_loss(features, labels, centers, gamma, epsilon_contrast, w1):
    # Pure-JAX replica of the PyTorch forward for validation.
    batch = features.shape[0]
    num_classes = centers.shape[0]
    dist = jnp.sum((features[:, None, :] - centers[None, :, :]) ** 2, axis=-1)
    logits = -gamma * dist
    logp = jax.nn.log_softmax(logits, axis=1)
    ce = -jnp.mean(logp[jnp.arange(batch), labels])
    cc = jnp.sum((centers[:, None, :] - centers[None, :, :]) ** 2, axis=-1)
    lcontrast = jnp.sum(cc[labels], axis=1) / (num_classes - 1)
    l2 = jnp.mean(jnp.maximum(epsilon_contrast - lcontrast, 0.0))
    return ce + w1 * l2


if __name__ == "__main__":
    # Small shapes; B deliberately not a multiple of tile_b to exercise the
    # multi-tile grid and batch padding/masking paths.
    B, C, D = 37, 4, 32
    gamma = 1.0
    epsilon_contrast = 4.0
    w1 = 0.5

    key = jax.random.PRNGKey(0)
    kf, kc, kl = jax.random.split(key, 3)
    features = jax.random.normal(kf, (B, D), dtype=jnp.float32)
    centers = jax.random.normal(kc, (C, D), dtype=jnp.float32)
    labels = jax.random.randint(kl, (B,), 0, C, dtype=jnp.int32)

    loss = qccpn_loss(features, labels, centers, gamma=gamma,
                      epsilon_contrast=epsilon_contrast, w1=w1, tile_b=8)
    loss = jax.block_until_ready(loss)

    ref = _reference_loss(features, labels, centers, gamma, epsilon_contrast, w1)
    ref = jax.block_until_ready(ref)

    assert jnp.allclose(loss, ref, rtol=5e-4, atol=5e-4), (loss, ref)
    print("KERNEL_OK")
</pallas_src>

<mosaic_0001>
module attributes {stable_mosaic.version = 11 : i64} {
  func.func @_qccpn_tile_kernel(%arg0: i32, %arg1: memref<8x32xf32, #tpu.memory_space<vmem>>, %arg2: memref<8x1xi32, #tpu.memory_space<vmem>>, %arg3: memref<128x32xf32, #tpu.memory_space<vmem>>, %arg4: memref<1x128xf32, #tpu.memory_space<vmem>>, %arg5: memref<1x128xf32, #tpu.memory_space<vmem>>, %arg6: memref<8x128xf32, #tpu.memory_space<vmem>>) attributes {dimension_semantics = [#tpu.dimension_semantics<parallel>], iteration_bounds = array<i64: 5>, scalar_prefetch = 0 : i64, scratch_operands = 0 : i64, tpu.core_type = #tpu.core_type<tc>, window_params = [{transform_indices = @transform_0, window_bounds = array<i64: 8, 32>}, {transform_indices = @transform_1, window_bounds = array<i64: 8, 1>}, {pipeline_mode = #tpu.pipeline_mode<synchronous>, transform_indices = @transform_2, window_bounds = array<i64: 128, 32>}, {pipeline_mode = #tpu.pipeline_mode<synchronous>, transform_indices = @transform_3, window_bounds = array<i64: 1, 128>}, {pipeline_mode = #tpu.pipeline_mode<synchronous>, transform_indices = @transform_4, window_bounds = array<i64: 1, 128>}, {transform_indices = @transform_5, window_bounds = array<i64: 8, 128>}]} {
    %c0 = arith.constant 0 : index
    %c0_0 = arith.constant 0 : index
    %0 = vector.load %arg1[%c0, %c0_0] : memref<8x32xf32, #tpu.memory_space<vmem>>, vector<8x32xf32>
    %c0_1 = arith.constant 0 : index
    %c0_2 = arith.constant 0 : index
    %1 = vector.load %arg3[%c0_1, %c0_2] : memref<128x32xf32, #tpu.memory_space<vmem>>, vector<128x32xf32>
    %c0_3 = arith.constant 0 : index
    %c0_4 = arith.constant 0 : index
    %2 = vector.load %arg2[%c0_3, %c0_4] : memref<8x1xi32, #tpu.memory_space<vmem>>, vector<8x1xi32>
    %c0_5 = arith.constant 0 : index
    %c0_6 = arith.constant 0 : index
    %3 = vector.load %arg4[%c0_5, %c0_6] : memref<1x128xf32, #tpu.memory_space<vmem>>, vector<1x128xf32>
    %c0_7 = arith.constant 0 : index
    %c0_8 = arith.constant 0 : index
    %4 = vector.load %arg5[%c0_7, %c0_8] : memref<1x128xf32, #tpu.memory_space<vmem>>, vector<1x128xf32>
    %5 = arith.mulf %0, %0 : vector<8x32xf32>
    %cst = arith.constant dense<0.000000e+00> : vector<8xf32>
    %6 = vector.multi_reduction <add>, %5, %cst [1] : vector<8x32xf32> to vector<8xf32>
    %7 = vector.shape_cast %6 : vector<8xf32> to vector<8x1xf32>
    %cst_9 = arith.constant dense<0.000000e+00> : vector<8x128xf32>
    %8 = tpu.matmul %0, %1, %cst_9 {dimension_numbers = #tpu.dot_dimension_numbers<[1], [1], [0], [0], [0, 0, 1, 0], [], []>} : vector<8x32xf32>, vector<128x32xf32>, vector<8x128xf32> -> vector<8x128xf32>
    %9 = vector.broadcast %7 : vector<8x1xf32> to vector<8x128xf32>
    %10 = vector.broadcast %3 : vector<1x128xf32> to vector<8x128xf32>
    %11 = arith.addf %9, %10 : vector<8x128xf32>
    %cst_10 = arith.constant 2.000000e+00 : f32
    %12 = vector.broadcast %cst_10 : f32 to vector<8x128xf32>
    %13 = arith.mulf %12, %8 : vector<8x128xf32>
    %14 = arith.subf %11, %13 : vector<8x128xf32>
    %cst_11 = arith.constant 0.000000e+00 : f32
    %15 = vector.broadcast %cst_11 : f32 to vector<8x128xf32>
    %16 = arith.maximumf %14, %15 : vector<8x128xf32>
    %17 = tpu.iota {dimensions = array<i32: 1>} : vector<8x128xi32>
    %c4_i32 = arith.constant 4 : i32
    %18 = vector.broadcast %c4_i32 : i32 to vector<8x128xi32>
    %19 = arith.cmpi slt, %17, %18 : vector<8x128xi32>
    %cst_12 = arith.constant -1.000000e+00 : f32
    %20 = vector.broadcast %cst_12 : f32 to vector<8x128xf32>
    %21 = arith.mulf %20, %16 : vector<8x128xf32>
    %cst_13 = arith.constant -1.000000e+30 : f32
    %22 = vector.broadcast %cst_13 : f32 to vector<8x128xf32>
    %23 = arith.select %19, %21, %22 : vector<8x128xi1>, vector<8x128xf32>
    %cst_14 = arith.constant dense<0xFF800000> : vector<8xf32>
    %24 = vector.multi_reduction <maximumf>, %23, %cst_14 [1] : vector<8x128xf32> to vector<8xf32>
    %25 = vector.shape_cast %24 : vector<8xf32> to vector<8x1xf32>
    %26 = vector.broadcast %25 : vector<8x1xf32> to vector<8x128xf32>
    %27 = arith.subf %23, %26 : vector<8x128xf32>
    %28 = math.exp %27 : vector<8x128xf32>
    %cst_15 = arith.constant dense<0.000000e+00> : vector<8xf32>
    %29 = vector.multi_reduction <add>, %28, %cst_15 [1] : vector<8x128xf32> to vector<8xf32>
    %30 = vector.shape_cast %29 : vector<8xf32> to vector<8x1xf32>
    %31 = math.log %30 : vector<8x1xf32>
    %32 = arith.addf %25, %31 : vector<8x1xf32>
    %33 = vector.broadcast %2 : vector<8x1xi32> to vector<8x128xi32>
    %34 = arith.cmpi eq, %17, %33 : vector<8x128xi32>
    %35 = arith.extui %34 : vector<8x128xi1> to vector<8x128xi32>
    %36 = arith.sitofp %35 : vector<8x128xi32> to vector<8x128xf32>
    %37 = arith.mulf %23, %36 : vector<8x128xf32>
    %cst_16 = arith.constant dense<0.000000e+00> : vector<8xf32>
    %38 = vector.multi_reduction <add>, %37, %cst_16 [1] : vector<8x128xf32> to vector<8xf32>
    %39 = vector.shape_cast %38 : vector<8xf32> to vector<8x1xf32>
    %c8_i32 = arith.constant 8 : i32
    %40 = arith.muli %arg0, %c8_i32 : i32
    %41 = tpu.iota {dimensions = array<i32: 0>} : vector<8x1xi32>
    %42 = vector.broadcast %40 : i32 to vector<8x1xi32>
    %43 = arith.addi %42, %41 : vector<8x1xi32>
    %c37_i32 = arith.constant 37 : i32
    %44 = vector.broadcast %c37_i32 : i32 to vector<8x1xi32>
    %45 = arith.cmpi slt, %43, %44 : vector<8x1xi32>
    %46 = arith.extui %45 : vector<8x1xi1> to vector<8x1xi32>
    %47 = arith.sitofp %46 : vector<8x1xi32> to vector<8x1xf32>
    %48 = arith.subf %32, %39 : vector<8x1xf32>
    %49 = arith.mulf %48, %47 : vector<8x1xf32>
    %50 = vector.shape_cast %49 : vector<8x1xf32> to vector<1x8x1xf32>
    %cst_17 = arith.constant dense<0.000000e+00> : vector<1xf32>
    %51 = vector.multi_reduction <add>, %50, %cst_17 [1, 2] : vector<1x8x1xf32> to vector<1xf32>
    %52 = vector.shape_cast %51 : vector<1xf32> to vector<1x1x1xf32>
    %53 = vector.extract %52[0, 0, 0] : f32 from vector<1x1x1xf32>
    %54 = vector.broadcast %4 : vector<1x128xf32> to vector<8x128xf32>
    %55 = arith.mulf %36, %54 : vector<8x128xf32>
    %cst_18 = arith.constant dense<0.000000e+00> : vector<8xf32>
    %56 = vector.multi_reduction <add>, %55, %cst_18 [1] : vector<8x128xf32> to vector<8xf32>
    %57 = vector.shape_cast %56 : vector<8xf32> to vector<8x1xf32>
    %58 = arith.mulf %57, %47 : vector<8x1xf32>
    %59 = vector.shape_cast %58 : vector<8x1xf32> to vector<1x8x1xf32>
    %cst_19 = arith.constant dense<0.000000e+00> : vector<1xf32>
    %60 = vector.multi_reduction <add>, %59, %cst_19 [1, 2] : vector<1x8x1xf32> to vector<1xf32>
    %61 = vector.shape_cast %60 : vector<1xf32> to vector<1x1x1xf32>
    %62 = vector.extract %61[0, 0, 0] : f32 from vector<1x1x1xf32>
    %63 = tpu.iota {dimensions = array<i32: 1>} : vector<8x128xi32>
    %c0_i32 = arith.constant 0 : i32
    %64 = vector.broadcast %c0_i32 : i32 to vector<8x128xi32>
    %65 = arith.cmpi eq, %63, %64 : vector<8x128xi32>
    %c1_i32 = arith.constant 1 : i32
    %66 = vector.broadcast %c1_i32 : i32 to vector<8x128xi32>
    %67 = arith.cmpi eq, %63, %66 : vector<8x128xi32>
    %cst_20 = arith.constant 0.000000e+00 : f32
    %68 = vector.broadcast %62 : f32 to vector<8x128xf32>
    %69 = vector.broadcast %cst_20 : f32 to vector<8x128xf32>
    %70 = arith.select %67, %68, %69 : vector<8x128xi1>, vector<8x128xf32>
    %71 = vector.broadcast %53 : f32 to vector<8x128xf32>
    %72 = arith.select %65, %71, %70 : vector<8x128xi1>, vector<8x128xf32>
    %c0_21 = arith.constant 0 : index
    %c0_22 = arith.constant 0 : index
    %73 = vector.load %arg6[%c0_21, %c0_22] : memref<8x128xf32, #tpu.memory_space<vmem>>, vector<8x128xf32>
    tpu.vector_store %arg6[%c0_21, %c0_22], %72 {strides = array<i32>} : memref<8x128xf32, #tpu.memory_space<vmem>>, vector<8x128xf32>,
    return
  }
  func.func @transform_0(%arg0: i32) -> (i32, i32) {
    %c0_i32 = arith.constant 0 : i32
    %c0_i32_0 = arith.constant 0 : i32
    return %arg0, %c0_i32 : i32, i32
  }
  func.func @transform_1(%arg0: i32) -> (i32, i32) {
    %c0_i32 = arith.constant 0 : i32
    %c0_i32_0 = arith.constant 0 : i32
    return %arg0, %c0_i32 : i32, i32
  }
  func.func @transform_2(%arg0: i32) -> (i32, i32) {
    %c0_i32 = arith.constant 0 : i32
    %c0_i32_0 = arith.constant 0 : i32
    %c0_i32_1 = arith.constant 0 : i32
    return %c0_i32, %c0_i32_0 : i32, i32
  }
  func.func @transform_3(%arg0: i32) -> (i32, i32) {
    %c0_i32 = arith.constant 0 : i32
    %c0_i32_0 = arith.constant 0 : i32
    %c0_i32_1 = arith.constant 0 : i32
    return %c0_i32, %c0_i32_0 : i32, i32
  }
  func.func @transform_4(%arg0: i32) -> (i32, i32) {
    %c0_i32 = arith.constant 0 : i32
    %c0_i32_0 = arith.constant 0 : i32
    %c0_i32_1 = arith.constant 0 : i32
    return %c0_i32, %c0_i32_0 : i32, i32
  }
  func.func @transform_5(%arg0: i32) -> (i32, i32) {
    %c0_i32 = arith.constant 0 : i32
    %c0_i32_0 = arith.constant 0 : i32
    return %arg0, %c0_i32 : i32, i32
  }
}

</mosaic_0001>

<llo_original>
// kernel: tpu_custom_call.1
$region0: #{tpu_custom_call.1}
  #allocation0 [shape = 'u32[]', space=smem, size = 0x4, offset = 0x4, fixed_abs, tag = 'smem constant byte address 0x4 - core index']
  #allocation1 [shape = 'u32[144,128]{1,0:T(1,128)}', space=vmem, size = 0x12000, scoped, tag = 'internal scratch']
  %s0 = inlined_call_operand.vmem [shape: f32[40,32], index: 0, kind: input, shape index: {}]
  %s1 = inlined_call_operand.vmem [shape: s32[40,1], index: 1, kind: input, shape index: {}]
  %s2 = inlined_call_operand.vmem [shape: f32[128,32], index: 2, kind: input, shape index: {}]
  %s3 = inlined_call_operand.vmem [shape: f32[1,128], index: 3, kind: input, shape index: {}]
  %s4 = inlined_call_operand.vmem [shape: f32[1,128], index: 4, kind: input, shape index: {}]
  %s5 = inlined_call_operand.hbm [shape: f32[40,128], index: 5, kind: output, shape index: {}]
  %s6 = sld [smem:[#allocation0]]
  $region53: #{tpu_custom_call.1} parent=0
    _
  %s8 = ssub.s32 1, %s6
  %s9 = scalar_select 0, %s8, %s6
  $region1: #{tpu_custom_call.1} parent=0
    #allocation2 [shape = 'u8[8192]{0}', space=vmem, size = 0x2000, scoped, tag = 'output window, operand 0']
    #allocation3 [shape = 's32[2]{0}', space=sflag, size = 0x8, scoped, tag = 'scoped memory for tpu_custom_call.1']
    %10 = vsyncpa [#allocation3], 0
    %s11 = scalar_lea.sflag [#allocation3], 1
    %12 = vsyncpa %s11, 0
    loop: start=0, step=1, limit=7
    $region2: #{tpu_custom_call.1} parent=1 // loop_pre_header
      _
    $region3: #{tpu_custom_call.1} parent=1 // loop_header
      %s14 = sphi 0, %s18
      %p15 = scmp.ge.s32.totalorder %s14, 7
      %s24 = sphi 0, %s26
      %s27 = sphi 0, %s24
      %s28 = sphi 0, %s27
      %s44 = sphi 0, %s28
      %s50 = sphi 0, %s52
      %s53 = sphi 0, %s50
      %s54 = sphi 0, %s53
      %s70 = sphi 0, %s54
      %s74 = sphi 0, %s74
      %s76 = sphi 0, %s74
      %s77 = sphi 0, %s76
      %s91 = sphi 0, %s77
      %s95 = sphi 0, %s95
      %s97 = sphi 0, %s95
      %s98 = sphi 0, %s97
      %s112 = sphi 0, %s98
      %s116 = sphi 0, %s116
      %s118 = sphi 0, %s116
      %s119 = sphi 0, %s118
      %s133 = sphi 0, %s119
      %s139 = sphi 0, %s141
      %s142 = sphi 0, %s139
      %s143 = sphi 0, %s142
      %s159 = sphi 0, %s143
    $region4: #{tpu_custom_call.1} parent=1 // loop_header_branch
      %17 = sbr.rel (%p15) target = $region8
    $region5: #{tpu_custom_call.1} parent=1 // loop_body
      %s19 = ssub.s32 %s14, 1
      %s20 = ssub.s32 %s14, 2
      %s21 = sadd.s32 %s14, 1
      %s22 = ssub.s32 %s14, %s21
      %p23 = scmp.eq.s32.totalorder %s22, 0
      %s25 = sadd.s32 %s24, 1
      %s26 = scalar_select %p23, %s24, %s25
      %p29 = pneg %p23
      %p30 = scmp.eq.s32.totalorder %s14, 4
      %p31 = por %p29, %p30
      %p32 = scmp.ne.s32.totalorder %s24, %s27
      %p33 = scmp.eq.s32.totalorder %s14, 0
      %p34 = por %p32, %p33
      %p35 = scmp.ne.s32.totalorder %s24, %s27
      %p36 = scmp.eq.s32.totalorder %s19, 4
      %p37 = por %p35, %p36
      %p38 = scmp.ne.s32.totalorder %s27, %s28
      %p39 = scmp.eq.s32.totalorder %s19, 0
      %p40 = por %p38, %p39
      %p41 = scmp.ne.s32.totalorder %s27, %s28
      %p42 = scmp.eq.s32.totalorder %s20, 4
      %p43 = por %p41, %p42
      %p45 = scmp.ne.s32.totalorder %s28, %s44
      %p46 = scmp.eq.s32.totalorder %s20, 0
      %p47 = por %p45, %p46
      %s48 = ssub.s32 %s14, %s21
      %p49 = scmp.eq.s32.totalorder %s48, 0
      %s51 = sadd.s32 %s50, 1
      %s52 = scalar_select %p49, %s50, %s51
      %p55 = pneg %p49
      %p56 = scmp.eq.s32.totalorder %s14, 4
      %p57 = por %p55, %p56
      %p58 = scmp.ne.s32.totalorder %s50, %s53
      %p59 = scmp.eq.s32.totalorder %s14, 0
      %p60 = por %p58, %p59
      %p61 = scmp.ne.s32.totalorder %s50, %s53
      %p62 = scmp.eq.s32.totalorder %s19, 4
      %p63 = por %p61, %p62
      %p64 = scmp.ne.s32.totalorder %s53, %s54
      %p65 = scmp.eq.s32.totalorder %s19, 0
      %p66 = por %p64, %p65
      %p67 = scmp.ne.s32.totalorder %s53, %s54
      %p68 = scmp.eq.s32.totalorder %s20, 4
      %p69 = por %p67, %p68
      %p71 = scmp.ne.s32.totalorder %s54, %s70
      %p72 = scmp.eq.s32.totalorder %s20, 0
      %p73 = por %p71, %p72
      %s75 = sadd.s32 %s74, 1
      %p78 = scmp.eq.s32.totalorder %s14, 4
      %p79 = scmp.ne.s32.totalorder %s74, %s76
      %p80 = scmp.eq.s32.totalorder %s14, 0
      %p81 = por %p79, %p80
      %p82 = scmp.ne.s32.totalorder %s74, %s76
      %p83 = scmp.eq.s32.totalorder %s19, 4
      %p84 = por %p82, %p83
      %p85 = scmp.ne.s32.totalorder %s76, %s77
      %p86 = scmp.eq.s32.totalorder %s19, 0
      %p87 = por %p85, %p86
      %p88 = scmp.ne.s32.totalorder %s76, %s77
      %p89 = scmp.eq.s32.totalorder %s20, 4
      %p90 = por %p88, %p89
      %p92 = scmp.ne.s32.totalorder %s77, %s91
      %p93 = scmp.eq.s32.totalorder %s20, 0
      %p94 = por %p92, %p93
      %s96 = sadd.s32 %s95, 1
      %p99 = scmp.eq.s32.totalorder %s14, 4
      %p100 = scmp.ne.s32.totalorder %s95, %s97
      %p101 = scmp.eq.s32.totalorder %s14, 0
      %p102 = por %p100, %p101
      %p103 = scmp.ne.s32.totalorder %s95, %s97
      %p104 = scmp.eq.s32.totalorder %s19, 4
      %p105 = por %p103, %p104
      %p106 = scmp.ne.s32.totalorder %s97, %s98
      %p107 = scmp.eq.s32.totalorder %s19, 0
      %p108 = por %p106, %p107
      %p109 = scmp.ne.s32.totalorder %s97, %s98
      %p110 = scmp.eq.s32.totalorder %s20, 4
      %p111 = por %p109, %p110
      %p113 = scmp.ne.s32.totalorder %s98, %s112
      %p114 = scmp.eq.s32.totalorder %s20, 0
      %p115 = por %p113, %p114
      %s117 = sadd.s32 %s116, 1
      %p120 = scmp.eq.s32.totalorder %s14, 4
      %p121 = scmp.ne.s32.totalorder %s116, %s118
      %p122 = scmp.eq.s32.totalorder %s14, 0
      %p123 = por %p121, %p122
      %p124 = scmp.ne.s32.totalorder %s116, %s118
      %p125 = scmp.eq.s32.totalorder %s19, 4
      %p126 = por %p124, %p125
      %p127 = scmp.ne.s32.totalorder %s118, %s119
      %p128 = scmp.eq.s32.totalorder %s19, 0
      %p129 = por %p127, %p128
      %p130 = scmp.ne.s32.totalorder %s118, %s119
      %p131 = scmp.eq.s32.totalorder %s20, 4
      %p132 = por %p130, %p131
      %p134 = scmp.ne.s32.totalorder %s119, %s133
      %p135 = scmp.eq.s32.totalorder %s20, 0
      %p136 = por %p134, %p135
      %s137 = ssub.s32 %s14, %s21
      %p138 = scmp.eq.s32.totalorder %s137, 0
      %s140 = sadd.s32 %s139, 1
      %s141 = scalar_select %p138, %s139, %s140
      %p144 = pneg %p138
      %p145 = scmp.eq.s32.totalorder %s14, 4
      %p146 = por %p144, %p145
      %p147 = scmp.ne.s32.totalorder %s139, %s142
      %p148 = scmp.eq.s32.totalorder %s14, 0
      %p149 = por %p147, %p148
      %p150 = scmp.ne.s32.totalorder %s139, %s142
      %p151 = scmp.eq.s32.totalorder %s19, 4
      %p152 = por %p150, %p151
      %p153 = scmp.ne.s32.totalorder %s142, %s143
      %p154 = scmp.eq.s32.totalorder %s19, 0
      %p155 = por %p153, %p154
      %p156 = scmp.ne.s32.totalorder %s142, %s143
      %p157 = scmp.eq.s32.totalorder %s20, 4
      %p158 = por %p156, %p157
      %p160 = scmp.ne.s32.totalorder %s143, %s159
      %p161 = scmp.eq.s32.totalorder %s20, 0
      %p162 = por %p160, %p161
      %p163 = scmp.le.s32.totalorder 1, %s14
      %p164 = scmp.lt.s32.totalorder %s14, 6
      %p165 = pnand %p163, %p164
      %p166 = pneg %p165
      // Predicated region
      $region9: #{tpu_custom_call.1} parent=5 // pred_check
        _
      $region10: #{tpu_custom_call.1} parent=5 // pred_check_branch
        %168 = sbr.rel (%p165) target = $region12
      $region11: #{tpu_custom_call.1} parent=5 // pred_region
        %s169 = ssub.s32 %s14, 1
        // Predicated region
        $region13: #{tpu_custom_call.1} parent=11 // pred_check
          %p170 = pneg %p87
        $region14: #{tpu_custom_call.1} parent=11 // pred_check_branch
          %172 = sbr.rel (%p170) target = $region16
        $region15: #{tpu_custom_call.1} parent=11 // pred_region
          _
        $region16: #{tpu_custom_call.1} parent=11 // pred_fallthru
          _
        // Predicated region
        $region17: #{tpu_custom_call.1} parent=11 // pred_check
          %p173 = pneg %p108
        $region18: #{tpu_custom_call.1} parent=11 // pred_check_branch
          %175 = sbr.rel (%p173) target = $region20
        $region19: #{tpu_custom_call.1} parent=11 // pred_region
          _
        $region20: #{tpu_custom_call.1} parent=11 // pred_fallthru
          _
        // Predicated region
        $region21: #{tpu_custom_call.1} parent=11 // pred_check
          %p176 = pneg %p129
        $region22: #{tpu_custom_call.1} parent=11 // pred_check_branch
          %178 = sbr.rel (%p176) target = $region24
        $region23: #{tpu_custom_call.1} parent=11 // pred_region
          _
        $region24: #{tpu_custom_call.1} parent=11 // pred_fallthru
          _
      $region12: #{tpu_custom_call.1} parent=5 // pred_fallthru
        _
      %p179 = scmp.lt.s32.totalorder %s14, 5
      // Predicated region
      $region25: #{tpu_custom_call.1} parent=5 // pred_check
        %p180 = pneg %p179
      $region26: #{tpu_custom_call.1} parent=5 // pred_check_branch
        %182 = sbr.rel (%p180) target = $region28
      $region27: #{tpu_custom_call.1} parent=5 // pred_region
        // Predicated region
        $region29: #{tpu_custom_call.1} parent=27 // pred_check
          %p183 = pneg %p34
        $region30: #{tpu_custom_call.1} parent=27 // pred_check_branch
          %185 = sbr.rel (%p183) target = $region32
        $region31: #{tpu_custom_call.1} parent=27 // pred_region
          %p186 = scmp.lt.s32.totalorder %s14, 4
          %s187 = scalar_select %p186, %s14, 4
          %s188 = smul.addr %s187, 8
          %s189 = scalar_lea.vmem %s0, %s188
        $region32: #{tpu_custom_call.1} parent=27 // pred_fallthru
          _
        // Predicated region
        $region33: #{tpu_custom_call.1} parent=27 // pred_check
          %p190 = pneg %p60
        $region34: #{tpu_custom_call.1} parent=27 // pred_check_branch
          %192 = sbr.rel (%p190) target = $region36
        $region35: #{tpu_custom_call.1} parent=27 // pred_region
          %p193 = scmp.lt.s32.totalorder %s14, 4
          %s194 = scalar_select %p193, %s14, 4
          %s195 = smul.addr %s194, 8
          %s196 = scalar_lea.vmem %s1, %s195
        $region36: #{tpu_custom_call.1} parent=27 // pred_fallthru
          _
      $region28: #{tpu_custom_call.1} parent=5 // pred_fallthru
        _
      %p197 = scmp.le.s32.totalorder 1, %s14
      %p198 = scmp.lt.s32.totalorder %s14, 6
      %p199 = pnand %p197, %p198
      %p200 = pneg %p199
      // Predicated region
      $region37: #{tpu_custom_call.1} parent=5 // pred_check
        _
      $region38: #{tpu_custom_call.1} parent=5 // pred_check_branch
        %202 = sbr.rel (%p199) target = $region40
      $region39: #{tpu_custom_call.1} parent=5 // pred_region
        %s203 = ssub.s32 %s14, 1
        %p204 = scmp.lt.s32.totalorder %s19, 4
        %s205 = scalar_select %p204, %s19, 4
        %s206 = smul.addr %s205, 8
        %s207 = scalar_lea.vmem %s0, %s206
        %p208 = pneg %p40
        %p209 = pneg %p37
        %p210 = scmp.lt.s32.totalorder %s19, 4
        %s211 = scalar_select %p210, %s19, 4
        %s212 = smul.addr %s211, 8
        %s213 = scalar_lea.vmem %s1, %s212
        %p214 = pneg %p66
        %p215 = pneg %p63
        %p216 = pneg %p87
        %p217 = pneg %p84
        %p218 = pneg %p108
        %p219 = pneg %p105
        %p220 = pneg %p129
        %p221 = pneg %p126
        %p222 = pneg %p155
        %p223 = pneg %p152
        %s224 = sand.u32 %s142, 1
        %s225 = scalar_lea.sflag [#allocation3], %s224
        %s226 = sand.u32 %s142, 1
        %s227 = smul.addr %s226, 8
        %s228 = scalar_lea.vmem [#allocation2], %s227
        %p229 = scmp.lt.s32.totalorder %s19, 4
        %s230 = scalar_select %p229, %s19, 4
        %s231 = smul.addr %s230, 8
        %s232 = scalar_lea.vmem %s0, %s231
        %p233 = scmp.lt.s32.totalorder %s19, 4
        %s234 = scalar_select %p233, %s19, 4
        %s235 = smul.addr %s234, 8
        %s236 = scalar_lea.vmem %s1, %s235
        %v237 = vld [vmem:[%s232] sm:$0xff]
        %v238 = vld [vmem:[%s2] sm:$0xff]
        %v239 = vld [vmem:[%s2 + $0x8] sm:$0xff]
        %v240 = vld [vmem:[%s2 + $0x10] sm:$0xff]
        %v241 = vld [vmem:[%s2 + $0x18] sm:$0xff]
        %v242 = vld [vmem:[%s2 + $0x20] sm:$0xff]
        %v243 = vld [vmem:[%s2 + $0x28] sm:$0xff]
        %v244 = vld [vmem:[%s2 + $0x30] sm:$0xff]
        %v245 = vld [vmem:[%s2 + $0x38] sm:$0xff]
        %v246 = vld [vmem:[%s2 + $0x40] sm:$0xff]
        %v247 = vld [vmem:[%s2 + $0x48] sm:$0xff]
        %v248 = vld [vmem:[%s2 + $0x50] sm:$0xff]
        %v249 = vld [vmem:[%s2 + $0x58] sm:$0xff]
        %v250 = vld [vmem:[%s2 + $0x60] sm:$0xff]
        %v251 = vld [vmem:[%s2 + $0x68] sm:$0xff]
        %v252 = vld [vmem:[%s2 + $0x70] sm:$0xff]
        %v253 = vld [vmem:[%s2 + $0x78] sm:$0xff]
        %v254 = vld [vmem:[%s236] sm:$0xff]
        %v255 = vld [vmem:[%s3] sm:$0x1]
        %v256 = vld [vmem:[%s4] sm:$0x1]
        %v257 = vmul.f32 %v237, %v237
        %vm258 = vcmask 261120
        %v259 = vsel %vm258, %v257, 0.0
        %260 = vadd.xlane.f32.xlu0 %v259
        %v261 = vpop.xlane.xlu0 %260
        %v263 = vsel %vm258, %v237, 0
        %v266 = vsel %vm258, %v238, 0
        %v269 = vsel %vm258, %v239, 0
        %v272 = vsel %vm258, %v240, 0
        %v275 = vsel %vm258, %v241, 0
        %v278 = vsel %vm258, %v242, 0
        %v281 = vsel %vm258, %v243, 0
        %v284 = vsel %vm258, %v244, 0
        %v287 = vsel %vm258, %v245, 0
        %v290 = vsel %vm258, %v246, 0
        %v293 = vsel %vm258, %v247, 0
        %v296 = vsel %vm258, %v248, 0
        %v299 = vsel %vm258, %v249, 0
        %v302 = vsel %vm258, %v250, 0
        %v305 = vsel %vm258, %v251, 0
        %v308 = vsel %vm258, %v252, 0
        %v311 = vsel %vm258, %v253, 0
        %313 = vmatprep.subr.mxu0 0.0
        %314 = vmatpush1.xpose.msra.mxu0 %v311
        %315 = vmatprep.subr.mxu0 0.0
        %316 = vmatpush1.xpose.msra.mxu0 %v308
        %317 = vmatprep.subr.mxu0 0.0
        %318 = vmatpush1.xpose.msra.mxu0 %v305
        %319 = vmatprep.subr.mxu0 0.0
        %320 = vmatpush1.xpose.msra.mxu0 %v302
        %321 = vmatprep.subr.mxu0 0.0
        %322 = vmatpush1.xpose.msra.mxu0 %v299
        %323 = vmatprep.subr.mxu0 0.0
        %324 = vmatpush1.xpose.msra.mxu0 %v296
        %325 = vmatprep.subr.mxu0 0.0
        %326 = vmatpush1.xpose.msra.mxu0 %v293
        %327 = vmatprep.subr.mxu0 0.0
        %328 = vmatpush1.xpose.msra.mxu0 %v290
        %329 = vmatprep.subr.mxu0 0.0
        %330 = vmatpush1.xpose.msra.mxu0 %v287
        %331 = vmatprep.subr.mxu0 0.0
        %332 = vmatpush1.xpose.msra.mxu0 %v284
        %333 = vmatprep.subr.mxu0 0.0
        %334 = vmatpush1.xpose.msra.mxu0 %v281
        %335 = vmatprep.subr.mxu0 0.0
        %336 = vmatpush1.xpose.msra.mxu0 %v278
        %337 = vmatprep.subr.mxu0 0.0
        %338 = vmatpush1.xpose.msra.mxu0 %v275
        %339 = vmatprep.subr.mxu0 0.0
        %340 = vmatpush1.xpose.msra.mxu0 %v272
        %341 = vmatprep.subr.mxu0 0.0
        %342 = vmatpush1.xpose.msra.mxu0 %v269
        %343 = vmatprep.subr.mxu0 0.0
        %344 = vmatpush1.xpose.msra.mxu0 %v266
        %345 = vmatprep.subr.mxu0 0.0
        %346 = vmatpush2.xpose.msra.mxu0 0.0
        %347 = vmatprep.subr.mxu0 0.0
        %348 = vmatpush2.xpose.msra.mxu0 0.0
        %349 = vmatprep.subr.mxu0 0.0
        %350 = vmatpush2.xpose.msra.mxu0 0.0
        %351 = vmatprep.subr.mxu0 0.0
        %352 = vmatpush2.xpose.msra.mxu0 0.0
        %353 = vmatprep.subr.mxu0 0.0
        %354 = vmatpush2.xpose.msra.mxu0 0.0
        %355 = vmatprep.subr.mxu0 0.0
        %356 = vmatpush2.xpose.msra.mxu0 0.0
        %357 = vmatprep.subr.mxu0 0.0
        %358 = vmatpush2.xpose.msra.mxu0 0.0
        %359 = vmatprep.subr.mxu0 0.0
        %360 = vmatpush2.xpose.msra.mxu0 0.0
        %361 = vmatprep.subr.mxu0 0.0
        %362 = vmatpush2.xpose.msra.mxu0 0.0
        %363 = vmatprep.subr.mxu0 0.0
        %364 = vmatpush2.xpose.msra.mxu0 0.0
        %365 = vmatprep.subr.mxu0 0.0
        %366 = vmatpush2.xpose.msra.mxu0 0.0
        %367 = vmatprep.subr.mxu0 0.0
        %368 = vmatpush2.xpose.msra.mxu0 0.0
        %369 = vmatprep.subr.mxu0 0.0
        %370 = vmatpush2.xpose.msra.mxu0 0.0
        %371 = vmatprep.subr.mxu0 0.0
        %372 = vmatpush2.xpose.msra.mxu0 0.0
        %373 = vmatprep.subr.mxu0 0.0
        %374 = vmatpush2.xpose.msra.mxu0 0.0
        %375 = vmatprep.subr.mxu0 0.0
        %376 = vmatpush2.xpose.msra.mxu0 0.0
        %377 = vmatprep.mubr.f32.mxu0 0.0
        %378 = vmatmul.mubr.f32.gmra.mxu0 %v263
        %v379 = vpop.f32.mrf.mxu0
        %v380 = vadd.f32 0.0, %v379
        %v381 = vpop.f32.mrf.mxu0
        %382 = vdwg.mxu0
        %v384 = vlaneseq
        %v385 = vshrl.u32 %v384, 7
        %v386 = vsub.s32 0, %v385
        %v387 = vrot.slane %v255, %v386
        %v389 = vadd.f32 %v261, %v387
        %v390 = vmul.f32 %v380, 2.0
        %v391 = vsub.f32 %v389, %v390
        %v392 = vmax.f32 %v391, 0.0
        %v393 = vlaneseq
        %v394 = vand.u32 %v393, 127
        %vm395 = vcmp.lt.s32.totalorder %v394, 4
        %v396 = vmul.f32 %v392, -1.0
        %v397 = vsel %vm395, %v396, -1e+30
        %398 = vmax.xlane.f32.xlu0 %v397
        %v399 = vpop.xlane.xlu0 %398
        %v400 = vsub.f32 %v397, %v399
        %v401 = vmul.f32 %v400, 1.442695
        %v402 = vpow.pop %v401
        %403 = vadd.xlane.f32.xlu0 %v402
        %v404 = vpop.xlane.xlu0 %403
        %v405 = vlog2.pop %v404
        %v406 = vmul.f32 %v405, 0.6931472
        %v407 = vadd.f32 %v399, %v406
        %408 = vset.pattern.permute.xlu0 0
        %409 = vperm.xlu0 %408, %v254
        %v410 = vpop.permute.xlu0 %409
        %vm411 = vcmp.eq.s32.totalorder %v394, %v410
        %v412 = vsel %vm411, 1, 0
        %v413 = vcvt.s32.f32 %v412
        %v414 = vmul.f32 %v397, %v413
        %415 = vadd.xlane.f32.xlu0 %v414
        %v416 = vpop.xlane.xlu0 %415
        %s417 = smul.u32 %s19, 8
        %v418 = vlaneseq
        %v419 = vshrl.u32 %v418, 7
        %v420 = vstv %s417
        %v421 = vadd.s32 %v420, %v419
        %vm422 = vcmp.lt.s32.totalorder %v421, 37
        %v423 = vsel %vm422, 1, 0
        %v424 = vcvt.s32.f32 %v423
        %v425 = vsub.f32 %v407, %v416
        %v426 = vmul.f32 %v425, %v424
        %vm427 = vcmask 7168
        %v428 = vsel %vm427, %v426, 0.0
        %429 = vadd.xlane.f32.xlu0 %v428
        %v430 = vpop.xlane.xlu0 %429
        %v431 = vrot.slane %v430, 4
        %v432 = vadd.f32 %v430, %v431
        %v433 = vrot.slane %v432, 2
        %v434 = vadd.f32 %v432, %v433
        %v435 = vrot.slane %v434, 1
        %v436 = vadd.f32 %v434, %v435
        %s437 = vtos %v436
        %v439 = vlaneseq
        %v440 = vshrl.u32 %v439, 7
        %v441 = vsub.s32 0, %v440
        %v442 = vrot.slane %v256, %v441
        %v444 = vmul.f32 %v413, %v442
        %445 = vadd.xlane.f32.xlu0 %v444
        %v446 = vpop.xlane.xlu0 %445
        %v447 = vmul.f32 %v446, %v424
        %v448 = vsel %vm427, %v447, 0.0
        %449 = vadd.xlane.f32.xlu0 %v448
        %v450 = vpop.xlane.xlu0 %449
        %v451 = vrot.slane %v450, 4
        %v452 = vadd.f32 %v450, %v451
        %v453 = vrot.slane %v452, 2
        %v454 = vadd.f32 %v452, %v453
        %v455 = vrot.slane %v454, 1
        %v456 = vadd.f32 %v454, %v455
        %s457 = vtos %v456
        %vm458 = vcmp.eq.s32.totalorder %v394, 0
        %vm459 = vcmp.eq.s32.totalorder %v394, 1
        %v460 = vstv %s457
        %v461 = vsel %vm459, %v460, 0.0
        %v462 = vstv %s437
        %v463 = vsel %vm458, %v462, %v461
        %464 = vst [vmem:[%s228] sm:$0xff] %v463
        %s465 = sand.u32 %s142, 1
        %s466 = scalar_lea.sflag [#allocation3], %s465
        %s467 = sand.u32 %s142, 1
        %s468 = smul.addr %s467, 8
        %s469 = scalar_lea.vmem [#allocation2], %s468
        // Predicated region
        $region41: #{tpu_custom_call.1} parent=39 // pred_check
          %p470 = pneg %p152
        $region42: #{tpu_custom_call.1} parent=39 // pred_check_branch
          %472 = sbr.rel (%p470) target = $region44
        $region43: #{tpu_custom_call.1} parent=39 // pred_region
          %s474 = ssub.s32 128, 128
          %475 = vsyncadd %s466, %s474
          %s476 = smul.addr %s19, 128
          %s477 = scalar_lea.hbm %s5, %s476
          %s479 = sshll.u32 %s469, 4
          %s480 = int_to_ptr.vmem [resolvable:$true] %s479
          %482 = dma.vmem_to_hbm [thread:$0]  %s480, 128, %s477, %s466
        $region44: #{tpu_custom_call.1} parent=39 // pred_fallthru
          _
      $region40: #{tpu_custom_call.1} parent=5 // pred_fallthru
        _
      %p483 = scmp.le.s32.totalorder 2, %s14
      // Predicated region
      $region45: #{tpu_custom_call.1} parent=5 // pred_check
        %p484 = pneg %p483
      $region46: #{tpu_custom_call.1} parent=5 // pred_check_branch
        %486 = sbr.rel (%p484) target = $region48
      $region47: #{tpu_custom_call.1} parent=5 // pred_region
        %s487 = ssub.s32 %s14, 2
        // Predicated region
        $region49: #{tpu_custom_call.1} parent=47 // pred_check
          %p488 = pneg %p158
        $region50: #{tpu_custom_call.1} parent=47 // pred_check_branch
          %490 = sbr.rel (%p488) target = $region52
        $region51: #{tpu_custom_call.1} parent=47 // pred_region
          %s491 = sand.u32 %s143, 1
          %s492 = scalar_lea.sflag [#allocation3], %s491
          %s493 = sand.u32 %s143, 1
          %s494 = smul.addr %s493, 8
          %s495 = scalar_lea.vmem [#allocation2], %s494
          %496 = dma.done %s492, 128
        $region52: #{tpu_custom_call.1} parent=47 // pred_fallthru
          _
      $region48: #{tpu_custom_call.1} parent=5 // pred_fallthru
        _
    $region6: #{tpu_custom_call.1} parent=1 // loop_footer
      %s18 = sadd.s32 1, %s14
    $region7: #{tpu_custom_call.1} parent=1 // loop_footer_branch
      %13 = sbr.rel target = $region3
    $region8: #{tpu_custom_call.1} parent=1 // loop_exit
      _
    %497 = vsyncpa [#allocation3], 1
    %s498 = scalar_lea.sflag [#allocation3], 1
    %499 = vsyncpa %s498, 1

</llo_original>
